<compile_context>
chip_gen: v7x
topology: tpu7x:2x2x1
jax: 0.10.0
libtpu: 0.0.40
codegen_flags: <defaults>
</compile_context>

<pallas_src>
import math
import functools

import jax
import jax.numpy as jnp
from jax.experimental import pallas as pl
from jax.experimental.pallas import tpu as pltpu


def _fcnet_fused_kernel(scales_ref, x_ref, *refs,
                        num_layers, apply_relu, compute_dtype):
    """Fused multi-layer weight-normalized MLP.

    scales_ref : (num_layers,) f32  SMEM   -- g_l / ||v_l||_F (scalar per layer)
    x_ref      : (tile_m, dims[0])  VMEM
    refs       : vt_0, b_0, vt_1, b_1, ..., vt_{L-1}, b_{L-1}, o_ref
       vt_l    : (dims[l], dims[l+1]) VMEM   (v transposed, resident)
       b_l     : (1, dims[l+1])       VMEM
       o_ref   : (tile_m, dims[-1])   VMEM
    """
    o_ref = refs[-1]
    h = x_ref[...]                                   # activations stay on-chip
    for l in range(num_layers):                      # statically unrolled
        vt = refs[2 * l][...]
        b = refs[2 * l + 1][...]
        s = scales_ref[l]
        if compute_dtype is not None:                # bf16 MXU path (optional)
            h_in = h.astype(compute_dtype)
            vt = vt.astype(compute_dtype)
        else:
            h_in = h
        # scale commutes through the matmul (scalar weight_norm, dim=None)
        y = jnp.dot(h_in, vt, preferred_element_type=jnp.float32)
        y = y * s + b                                # f32 epilogue (v5e-safe)
        if apply_relu:
            y = jnp.maximum(y, 0.0)
        h = y
    o_ref[...] = h.astype(o_ref.dtype)


def fcnet_forward(x, vts, biases, scales, *, apply_relu=True,
                  tile_m=None, compute_dtype=None):
    """Run the fused FCNet forward pass.

    x      : (N, dims[0])
    vts    : list of (dims[l], dims[l+1]) pre-transposed weights
    biases : list of (1, dims[l+1])
    scales : (num_layers,) f32
    """
    n, in0 = x.shape
    num_layers = len(vts)
    out_dim = vts[-1].shape[1]

    if tile_m is None:
        # multiple of 8 sublanes, capped so large batches pipeline + shard
        tile_m = min(512, ((n + 7) // 8) * 8)
    n_pad = pl.cdiv(n, tile_m) * tile_m
    if n_pad != n:
        x = jnp.pad(x, ((0, n_pad - n), (0, 0)))

    in_specs = [
        pl.BlockSpec(memory_space=pltpu.SMEM),                 # scales
        pl.BlockSpec((tile_m, in0), lambda i: (i, 0)),         # x tile
    ]
    weight_args = []
    for vt, b in zip(vts, biases):
        kd, od = vt.shape
        in_specs.append(pl.BlockSpec((kd, od), lambda i: (0, 0)))   # resident
        in_specs.append(pl.BlockSpec((1, od), lambda i: (0, 0)))    # resident
        weight_args.extend([vt, b])

    kernel = functools.partial(
        _fcnet_fused_kernel,
        num_layers=num_layers,
        apply_relu=apply_relu,
        compute_dtype=compute_dtype,
    )

    out = pl.pallas_call(
        kernel,
        out_shape=jax.ShapeDtypeStruct((n_pad, out_dim), x.dtype),
        grid_spec=pltpu.PrefetchScalarGridSpec(
            num_scalar_prefetch=0,
            grid=(n_pad // tile_m,),
            in_specs=in_specs,
            out_specs=pl.BlockSpec((tile_m, out_dim), lambda i: (i, 0)),
        ),
        compiler_params=pltpu.CompilerParams(
            dimension_semantics=("parallel",)),   # megacore / v7x 2-TC sharding
        # NOTE: weights for [32,64,32] total ~16 KiB; default scoped VMEM is
        # plenty on v5e/v6e/v7x.  For much wider nets, set vmem_limit_bytes and
        # add a K grid axis with an f32 accumulator.
    )(jnp.asarray(scales, jnp.float32), x, *weight_args)

    if n_pad != n:
        out = out[:n]
    return out


class FCNetPallas:
    """JAX/Pallas port of FCNet(dims, act='ReLU', dropout=0)."""

    def __init__(self, dims, key, act='ReLU', dropout=0.0):
        assert act in ('', 'ReLU'), "only ReLU / no-act supported here"
        # TODO(synk): training-mode dropout (dropout > 0) not implemented; eval no-op.
        self.act = act
        self.vs, self.gs, self.bs = [], [], []        # raw params (for reference)
        self.vts, self.biases = [], []                # kernel-ready (pre-transposed)
        scales = []
        for i in range(len(dims) - 1):
            key, k_w, k_b = jax.random.split(key, 3)
            in_dim, out_dim = dims[i], dims[i + 1]
            bound = 1.0 / math.sqrt(in_dim)           # nn.Linear default init range
            v = jax.random.uniform(k_w, (out_dim, in_dim), jnp.float32, -bound, bound)
            b = jax.random.uniform(k_b, (out_dim,), jnp.float32, -bound, bound)
            g = jnp.sqrt(jnp.sum(v * v))              # weight_norm init: g = ||v||_F
            self.vs.append(v)
            self.gs.append(g)
            self.bs.append(b)
            self.vts.append(jnp.transpose(v))                     # (in_dim, out_dim)
            self.biases.append(jnp.reshape(b.astype(jnp.float32), (1, out_dim)))
            scales.append(g / jnp.sqrt(jnp.sum(v * v)))           # hoisted norm
        self.scales = jnp.stack(scales).astype(jnp.float32)       # (num_layers,)

    def __call__(self, x, *, tile_m=None, compute_dtype=None):
        return fcnet_forward(x, self.vts, self.biases, self.scales,
                             apply_relu=(self.act != ''),
                             tile_m=tile_m, compute_dtype=compute_dtype)

    def reference(self, x):
        """Pure-JAX reference (matches PyTorch weight_norm(dim=None) + ReLU)."""
        for v, g, b in zip(self.vs, self.gs, self.bs):
            w = g * v / jnp.sqrt(jnp.sum(v * v))
            x = x @ w.T + b
            if self.act != '':
                x = jnp.maximum(x, 0.0)
        return x


if __name__ == "__main__":
    key = jax.random.PRNGKey(0)
    k_params, k_x = jax.random.split(key)

    dims = [32, 64, 32]          # FCNet([32, 64, 32])
    batch = 8
    net = FCNetPallas(dims, k_params)

    x = jax.random.normal(k_x, (batch, dims[0]), jnp.float32)

    out = net(x)
    out = jax.block_until_ready(out)

    ref = net.reference(x)
    assert out.shape == (batch, dims[-1])
    assert jnp.allclose(out, ref, atol=1e-5, rtol=1e-5), \
        f"max abs err {jnp.max(jnp.abs(out - ref))}"

    print("KERNEL_OK")
</pallas_src>

<mosaic_0001>
module attributes {stable_mosaic.version = 11 : i64} {
  func.func @_fcnet_fused_kernel(%arg0: i32, %arg1: memref<2xf32, #tpu.memory_space<smem>>, %arg2: memref<8x32xf32, #tpu.memory_space<vmem>>, %arg3: memref<32x64xf32, #tpu.memory_space<vmem>>, %arg4: memref<1x64xf32, #tpu.memory_space<vmem>>, %arg5: memref<64x32xf32, #tpu.memory_space<vmem>>, %arg6: memref<1x32xf32, #tpu.memory_space<vmem>>, %arg7: memref<8x32xf32, #tpu.memory_space<vmem>>) attributes {dimension_semantics = [#tpu.dimension_semantics<parallel>], iteration_bounds = array<i64: 1>, scalar_prefetch = 0 : i64, scratch_operands = 0 : i64, tpu.core_type = #tpu.core_type<tc>, window_params = [{transform_indices = @transform_0, window_bounds = array<i64: 2>}, {transform_indices = @transform_1, window_bounds = array<i64: 8, 32>}, {pipeline_mode = #tpu.pipeline_mode<synchronous>, transform_indices = @transform_2, window_bounds = array<i64: 32, 64>}, {pipeline_mode = #tpu.pipeline_mode<synchronous>, transform_indices = @transform_3, window_bounds = array<i64: 1, 64>}, {pipeline_mode = #tpu.pipeline_mode<synchronous>, transform_indices = @transform_4, window_bounds = array<i64: 64, 32>}, {pipeline_mode = #tpu.pipeline_mode<synchronous>, transform_indices = @transform_5, window_bounds = array<i64: 1, 32>}, {transform_indices = @transform_6, window_bounds = array<i64: 8, 32>}]} {
    %c0 = arith.constant 0 : index
    %c0_0 = arith.constant 0 : index
    %0 = vector.load %arg2[%c0, %c0_0] : memref<8x32xf32, #tpu.memory_space<vmem>>, vector<8x32xf32>
    %c0_1 = arith.constant 0 : index
    %c0_2 = arith.constant 0 : index
    %1 = vector.load %arg3[%c0_1, %c0_2] : memref<32x64xf32, #tpu.memory_space<vmem>>, vector<32x64xf32>
    %c0_3 = arith.constant 0 : index
    %c0_4 = arith.constant 0 : index
    %2 = vector.load %arg4[%c0_3, %c0_4] : memref<1x64xf32, #tpu.memory_space<vmem>>, vector<1x64xf32>
    %c0_5 = arith.constant 0 : index
    %3 = memref.load %arg1[%c0_5] : memref<2xf32, #tpu.memory_space<smem>>
    %cst = arith.constant dense<0.000000e+00> : vector<8x64xf32>
    %4 = tpu.matmul %0, %1, %cst {dimension_numbers = #tpu.dot_dimension_numbers<[1], [0], [0], [1], [0, 0, 1, 1], [], []>} : vector<8x32xf32>, vector<32x64xf32>, vector<8x64xf32> -> vector<8x64xf32>
    %5 = vector.broadcast %3 : f32 to vector<8x64xf32>
    %6 = arith.mulf %4, %5 : vector<8x64xf32>
    %7 = vector.broadcast %2 : vector<1x64xf32> to vector<8x64xf32>
    %8 = arith.addf %6, %7 : vector<8x64xf32>
    %cst_6 = arith.constant 0.000000e+00 : f32
    %9 = vector.broadcast %cst_6 : f32 to vector<8x64xf32>
    %10 = arith.maximumf %8, %9 : vector<8x64xf32>
    %c0_7 = arith.constant 0 : index
    %c0_8 = arith.constant 0 : index
    %11 = vector.load %arg5[%c0_7, %c0_8] : memref<64x32xf32, #tpu.memory_space<vmem>>, vector<64x32xf32>
    %c0_9 = arith.constant 0 : index
    %c0_10 = arith.constant 0 : index
    %12 = vector.load %arg6[%c0_9, %c0_10] : memref<1x32xf32, #tpu.memory_space<vmem>>, vector<1x32xf32>
    %c1 = arith.constant 1 : index
    %13 = memref.load %arg1[%c1] : memref<2xf32, #tpu.memory_space<smem>>
    %cst_11 = arith.constant dense<0.000000e+00> : vector<8x32xf32>
    %14 = tpu.matmul %10, %11, %cst_11 {dimension_numbers = #tpu.dot_dimension_numbers<[1], [0], [0], [1], [0, 0, 1, 1], [], []>} : vector<8x64xf32>, vector<64x32xf32>, vector<8x32xf32> -> vector<8x32xf32>
    %15 = vector.broadcast %13 : f32 to vector<8x32xf32>
    %16 = arith.mulf %14, %15 : vector<8x32xf32>
    %17 = vector.broadcast %12 : vector<1x32xf32> to vector<8x32xf32>
    %18 = arith.addf %16, %17 : vector<8x32xf32>
    %cst_12 = arith.constant 0.000000e+00 : f32
    %19 = vector.broadcast %cst_12 : f32 to vector<8x32xf32>
    %20 = arith.maximumf %18, %19 : vector<8x32xf32>
    %c0_13 = arith.constant 0 : index
    %c0_14 = arith.constant 0 : index
    %21 = vector.load %arg7[%c0_13, %c0_14] : memref<8x32xf32, #tpu.memory_space<vmem>>, vector<8x32xf32>
    tpu.vector_store %arg7[%c0_13, %c0_14], %20 {strides = array<i32>} : memref<8x32xf32, #tpu.memory_space<vmem>>, vector<8x32xf32>,
    return
  }
  func.func @transform_0(%arg0: i32) -> i32 {
    %c0_i32 = arith.constant 0 : i32
    %c0_i32_0 = arith.constant 0 : i32
    return %c0_i32 : i32
  }
  func.func @transform_1(%arg0: i32) -> (i32, i32) {
    %c0_i32 = arith.constant 0 : i32
    %c0_i32_0 = arith.constant 0 : i32
    return %arg0, %c0_i32 : i32, i32
  }
  func.func @transform_2(%arg0: i32) -> (i32, i32) {
    %c0_i32 = arith.constant 0 : i32
    %c0_i32_0 = arith.constant 0 : i32
    %c0_i32_1 = arith.constant 0 : i32
    return %c0_i32, %c0_i32_0 : i32, i32
  }
  func.func @transform_3(%arg0: i32) -> (i32, i32) {
    %c0_i32 = arith.constant 0 : i32
    %c0_i32_0 = arith.constant 0 : i32
    %c0_i32_1 = arith.constant 0 : i32
    return %c0_i32, %c0_i32_0 : i32, i32
  }
  func.func @transform_4(%arg0: i32) -> (i32, i32) {
    %c0_i32 = arith.constant 0 : i32
    %c0_i32_0 = arith.constant 0 : i32
    %c0_i32_1 = arith.constant 0 : i32
    return %c0_i32, %c0_i32_0 : i32, i32
  }
  func.func @transform_5(%arg0: i32) -> (i32, i32) {
    %c0_i32 = arith.constant 0 : i32
    %c0_i32_0 = arith.constant 0 : i32
    %c0_i32_1 = arith.constant 0 : i32
    return %c0_i32, %c0_i32_0 : i32, i32
  }
  func.func @transform_6(%arg0: i32) -> (i32, i32) {
    %c0_i32 = arith.constant 0 : i32
    %c0_i32_0 = arith.constant 0 : i32
    return %arg0, %c0_i32 : i32, i32
  }
}

</mosaic_0001>

<llo_original>
// kernel: tpu_custom_call.1
$region0: #{tpu_custom_call.1}
  #allocation0 [shape = 'u32[]', space=smem, size = 0x4, offset = 0x4, fixed_abs, tag = 'smem constant byte address 0x4 - core index']
  #allocation1 [shape = 'u32[144,128]{1,0:T(1,128)}', space=vmem, size = 0x12000, scoped, tag = 'internal scratch']
  %s0 = inlined_call_operand.vmem [shape: f32[2], index: 0, kind: input, shape index: {}]
  %s1 = inlined_call_operand.vmem [shape: f32[8,32], index: 1, kind: input, shape index: {}]
  %s2 = inlined_call_operand.vmem [shape: f32[32,64], index: 2, kind: input, shape index: {}]
  %s3 = inlined_call_operand.vmem [shape: f32[1,64], index: 3, kind: input, shape index: {}]
  %s4 = inlined_call_operand.vmem [shape: f32[64,32], index: 4, kind: input, shape index: {}]
  %s5 = inlined_call_operand.vmem [shape: f32[1,32], index: 5, kind: input, shape index: {}]
  %s6 = inlined_call_operand.hbm [shape: f32[8,32], index: 6, kind: output, shape index: {}]
  %s7 = sld [smem:[#allocation0]]
  $region38: #{tpu_custom_call.1} parent=0
    _
  %s9 = ssub.s32 1, %s7
  %s10 = scalar_select 0, %s9, %s7
  $region1: #{tpu_custom_call.1} parent=0
    #allocation2 [shape = 'u8[512]{0}', space=smem, size = 0x200, scoped, tag = 'input window, operand 0, single buffered']
    #allocation3 [shape = 's32[1]{0}', space=sflag, size = 0x4, scoped, tag = 'scoped memory for tpu_custom_call.1']
    #allocation4 [shape = 's32[1]{0}', space=sflag, size = 0x4, scoped, tag = 'scoped memory for tpu_custom_call.1']
    #allocation5 [shape = 'u8[4096]{0}', space=vmem, size = 0x1000, scoped, tag = 'output window, operand 0, single buffered']
    %11 = vsyncpa [#allocation4], 0
    %12 = vsyncpa [#allocation3], 0
    // Predicated region
    $region2: #{tpu_custom_call.1} parent=1 // pred_check
      _
    $region3: #{tpu_custom_call.1} parent=1 // pred_check_branch
      %14 = sbr.rel (0) target = $region5
    $region4: #{tpu_custom_call.1} parent=1 // pred_region
      %s16 = ssub.s32 16, 16
      %17 = vsyncadd [#allocation4], %s16
      %s19 = sshll.u32 %s0, 4
      %s20 = int_to_ptr.vmem [resolvable:$true] %s19
      %22 = dma.vmem_to_smem %s20, 16, [#allocation2], [#allocation4]
    $region5: #{tpu_custom_call.1} parent=1 // pred_fallthru
      _
    // Predicated region
    $region6: #{tpu_custom_call.1} parent=1 // pred_check
      _
    $region7: #{tpu_custom_call.1} parent=1 // pred_check_branch
      %24 = sbr.rel (0) target = $region9
    $region8: #{tpu_custom_call.1} parent=1 // pred_region
      _
    $region9: #{tpu_custom_call.1} parent=1 // pred_fallthru
      _
    // Predicated region
    $region10: #{tpu_custom_call.1} parent=1 // pred_check
      _
    $region11: #{tpu_custom_call.1} parent=1 // pred_check_branch
      %26 = sbr.rel (0) target = $region13
    $region12: #{tpu_custom_call.1} parent=1 // pred_region
      _
    $region13: #{tpu_custom_call.1} parent=1 // pred_fallthru
      _
    // Predicated region
    $region14: #{tpu_custom_call.1} parent=1 // pred_check
      _
    $region15: #{tpu_custom_call.1} parent=1 // pred_check_branch
      %28 = sbr.rel (0) target = $region17
    $region16: #{tpu_custom_call.1} parent=1 // pred_region
      _
    $region17: #{tpu_custom_call.1} parent=1 // pred_fallthru
      _
    // Predicated region
    $region18: #{tpu_custom_call.1} parent=1 // pred_check
      _
    $region19: #{tpu_custom_call.1} parent=1 // pred_check_branch
      %30 = sbr.rel (0) target = $region21
    $region20: #{tpu_custom_call.1} parent=1 // pred_region
      _
    $region21: #{tpu_custom_call.1} parent=1 // pred_fallthru
      _
    // Predicated region
    $region22: #{tpu_custom_call.1} parent=1 // pred_check
      _
    $region23: #{tpu_custom_call.1} parent=1 // pred_check_branch
      %32 = sbr.rel (0) target = $region25
    $region24: #{tpu_custom_call.1} parent=1 // pred_region
      _
    $region25: #{tpu_custom_call.1} parent=1 // pred_fallthru
      _
    // Predicated region
    $region26: #{tpu_custom_call.1} parent=1 // pred_check
      _
    $region27: #{tpu_custom_call.1} parent=1 // pred_check_branch
      %34 = sbr.rel (0) target = $region29
    $region28: #{tpu_custom_call.1} parent=1 // pred_region
      %35 = dma.done [#allocation4], 16
    $region29: #{tpu_custom_call.1} parent=1 // pred_fallthru
      _
    %36 = sfence
    %v37 = vld [vmem:[%s1] sm:$0xff]
    %v38 = vld [vmem:[%s2] sm:$0xff]
    %v39 = vld [vmem:[%s2 + $0x8] sm:$0xff]
    %v40 = vld [vmem:[%s2 + $0x10] sm:$0xff]
    %v41 = vld [vmem:[%s2 + $0x18] sm:$0xff]
    %v42 = vld [vmem:[%s3] sm:$0x1]
    %s43 = sld [smem:[#allocation2]]
    %vm44 = vcmask 261120
    %v46 = vsel %vm44, %v37, 0
    %48 = vmatprep.subr.mxu0 0.0
    %49 = vmatpush1.msra.mxu0 %v38
    %50 = vmatprep.subr.mxu0 0.0
    %51 = vmatpush1.msra.mxu0 %v39
    %52 = vmatprep.subr.mxu0 0.0
    %53 = vmatpush1.msra.mxu0 %v40
    %54 = vmatprep.subr.mxu0 0.0
    %55 = vmatpush1.msra.mxu0 %v41
    %56 = vmatprep.subr.mxu0 0.0
    %57 = vmatpush1.msra.mxu0 0.0
    %58 = vmatprep.subr.mxu0 0.0
    %59 = vmatpush1.msra.mxu0 0.0
    %60 = vmatprep.subr.mxu0 0.0
    %61 = vmatpush1.msra.mxu0 0.0
    %62 = vmatprep.subr.mxu0 0.0
    %63 = vmatpush1.msra.mxu0 0.0
    %64 = vmatprep.subr.mxu0 0.0
    %65 = vmatpush1.msra.mxu0 0.0
    %66 = vmatprep.subr.mxu0 0.0
    %67 = vmatpush1.msra.mxu0 0.0
    %68 = vmatprep.subr.mxu0 0.0
    %69 = vmatpush1.msra.mxu0 0.0
    %70 = vmatprep.subr.mxu0 0.0
    %71 = vmatpush1.msra.mxu0 0.0
    %72 = vmatprep.subr.mxu0 0.0
    %73 = vmatpush1.msra.mxu0 0.0
    %74 = vmatprep.subr.mxu0 0.0
    %75 = vmatpush1.msra.mxu0 0.0
    %76 = vmatprep.subr.mxu0 0.0
    %77 = vmatpush1.msra.mxu0 0.0
    %78 = vmatprep.subr.mxu0 0.0
    %79 = vmatpush1.msra.mxu0 0.0
    %80 = vmatprep.subr.mxu0 0.0
    %81 = vmatpush1.msra.mxu0 0.0
    %82 = vmatprep.subr.mxu0 0.0
    %83 = vmatpush1.msra.mxu0 0.0
    %84 = vmatprep.subr.mxu0 0.0
    %85 = vmatpush1.msra.mxu0 0.0
    %86 = vmatprep.subr.mxu0 0.0
    %87 = vmatpush1.msra.mxu0 0.0
    %88 = vmatprep.subr.mxu0 0.0
    %89 = vmatpush1.msra.mxu0 0.0
    %90 = vmatprep.subr.mxu0 0.0
    %91 = vmatpush1.msra.mxu0 0.0
    %92 = vmatprep.subr.mxu0 0.0
    %93 = vmatpush1.msra.mxu0 0.0
    %94 = vmatprep.subr.mxu0 0.0
    %95 = vmatpush1.msra.mxu0 0.0
    %96 = vmatprep.subr.mxu0 0.0
    %97 = vmatpush1.msra.mxu0 0.0
    %98 = vmatprep.subr.mxu0 0.0
    %99 = vmatpush1.msra.mxu0 0.0
    %100 = vmatprep.subr.mxu0 0.0
    %101 = vmatpush1.msra.mxu0 0.0
    %102 = vmatprep.subr.mxu0 0.0
    %103 = vmatpush1.msra.mxu0 0.0
    %104 = vmatprep.subr.mxu0 0.0
    %105 = vmatpush1.msra.mxu0 0.0
    %106 = vmatprep.subr.mxu0 0.0
    %107 = vmatpush1.msra.mxu0 0.0
    %108 = vmatprep.subr.mxu0 0.0
    %109 = vmatpush1.msra.mxu0 0.0
    %110 = vmatprep.subr.mxu0 0.0
    %111 = vmatpush1.msra.mxu0 0.0
    %112 = vmatprep.mubr.f32.mxu0 0.0
    %113 = vmatmul.mubr.f32.gmra.mrb[0].mxu0 %v46
    %v114 = vpop.f32.mrb[0].mxu0
    %v115 = vadd.f32 0.0, %v114
    %v116 = vpop.f32.mrb[0].mxu0
    %117 = vdwg.mxu0
    %v118 = vstv %s43
    %v119 = vmul.f32 %v115, %v118
    %v121 = vlaneseq
    %v122 = vshrl.u32 %v121, 7
    %v123 = vsub.s32 0, %v122
    %v124 = vrot.slane %v42, %v123
    %v126 = vadd.f32 %v119, %v124
    %v127 = vmax.f32 %v126, 0.0
    %v128 = vld [vmem:[%s4] sm:$0xff]
    %v129 = vld [vmem:[%s4 + $0x8] sm:$0xff]
    %v130 = vld [vmem:[%s4 + $0x10] sm:$0xff]
    %v131 = vld [vmem:[%s4 + $0x18] sm:$0xff]
    %v132 = vld [vmem:[%s4 + $0x20] sm:$0xff]
    %v133 = vld [vmem:[%s4 + $0x28] sm:$0xff]
    %v134 = vld [vmem:[%s4 + $0x30] sm:$0xff]
    %v135 = vld [vmem:[%s4 + $0x38] sm:$0xff]
    %v136 = vld [vmem:[%s5] sm:$0x1]
    %s137 = sld [smem:[#allocation2 + $0x1]]
    %vm138 = vcmask 523264
    %v140 = vsel %vm138, %v127, 0
    %142 = vmatprep.subr.mxu0 0.0
    %143 = vmatpush1.msra.mxu0 %v128
    %144 = vmatprep.subr.mxu0 0.0
    %145 = vmatpush1.msra.mxu0 %v129
    %146 = vmatprep.subr.mxu0 0.0
    %147 = vmatpush1.msra.mxu0 %v130
    %148 = vmatprep.subr.mxu0 0.0
    %149 = vmatpush1.msra.mxu0 %v131
    %150 = vmatprep.subr.mxu0 0.0
    %151 = vmatpush1.msra.mxu0 %v132
    %152 = vmatprep.subr.mxu0 0.0
    %153 = vmatpush1.msra.mxu0 %v133
    %154 = vmatprep.subr.mxu0 0.0
    %155 = vmatpush1.msra.mxu0 %v134
    %156 = vmatprep.subr.mxu0 0.0
    %157 = vmatpush1.msra.mxu0 %v135
    %158 = vmatprep.subr.mxu0 0.0
    %159 = vmatpush1.msra.mxu0 0.0
    %160 = vmatprep.subr.mxu0 0.0
    %161 = vmatpush1.msra.mxu0 0.0
    %162 = vmatprep.subr.mxu0 0.0
    %163 = vmatpush1.msra.mxu0 0.0
    %164 = vmatprep.subr.mxu0 0.0
    %165 = vmatpush1.msra.mxu0 0.0
    %166 = vmatprep.subr.mxu0 0.0
    %167 = vmatpush1.msra.mxu0 0.0
    %168 = vmatprep.subr.mxu0 0.0
    %169 = vmatpush1.msra.mxu0 0.0
    %170 = vmatprep.subr.mxu0 0.0
    %171 = vmatpush1.msra.mxu0 0.0
    %172 = vmatprep.subr.mxu0 0.0
    %173 = vmatpush1.msra.mxu0 0.0
    %174 = vmatprep.subr.mxu0 0.0
    %175 = vmatpush1.msra.mxu0 0.0
    %176 = vmatprep.subr.mxu0 0.0
    %177 = vmatpush1.msra.mxu0 0.0
    %178 = vmatprep.subr.mxu0 0.0
    %179 = vmatpush1.msra.mxu0 0.0
    %180 = vmatprep.subr.mxu0 0.0
    %181 = vmatpush1.msra.mxu0 0.0
    %182 = vmatprep.subr.mxu0 0.0
    %183 = vmatpush1.msra.mxu0 0.0
    %184 = vmatprep.subr.mxu0 0.0
    %185 = vmatpush1.msra.mxu0 0.0
    %186 = vmatprep.subr.mxu0 0.0
    %187 = vmatpush1.msra.mxu0 0.0
    %188 = vmatprep.subr.mxu0 0.0
    %189 = vmatpush1.msra.mxu0 0.0
    %190 = vmatprep.subr.mxu0 0.0
    %191 = vmatpush1.msra.mxu0 0.0
    %192 = vmatprep.subr.mxu0 0.0
    %193 = vmatpush1.msra.mxu0 0.0
    %194 = vmatprep.subr.mxu0 0.0
    %195 = vmatpush1.msra.mxu0 0.0
    %196 = vmatprep.subr.mxu0 0.0
    %197 = vmatpush1.msra.mxu0 0.0
    %198 = vmatprep.subr.mxu0 0.0
    %199 = vmatpush1.msra.mxu0 0.0
    %200 = vmatprep.subr.mxu0 0.0
    %201 = vmatpush1.msra.mxu0 0.0
    %202 = vmatprep.subr.mxu0 0.0
    %203 = vmatpush1.msra.mxu0 0.0
    %204 = vmatprep.subr.mxu0 0.0
    %205 = vmatpush1.msra.mxu0 0.0
    %206 = vmatprep.mubr.f32.mxu0 0.0
    %207 = vmatmul.mubr.f32.gmra.mrb[0].mxu0 %v140
    %v208 = vpop.f32.mrb[0].mxu0
    %v209 = vadd.f32 0.0, %v208
    %v210 = vpop.f32.mrb[0].mxu0
    %211 = vdwg.mxu0
    %v212 = vstv %s137
    %v213 = vmul.f32 %v209, %v212
    %v215 = vlaneseq
    %v216 = vshrl.u32 %v215, 7
    %v217 = vsub.s32 0, %v216
    %v218 = vrot.slane %v136, %v217
    %v220 = vadd.f32 %v213, %v218
    %v221 = vmax.f32 %v220, 0.0
    %222 = vst.msk [vmem:[#allocation5] sm:$0xff] %vm44, %v221
    // Predicated region
    $region30: #{tpu_custom_call.1} parent=1 // pred_check
      _
    $region31: #{tpu_custom_call.1} parent=1 // pred_check_branch
      %224 = sbr.rel (0) target = $region33
    $region32: #{tpu_custom_call.1} parent=1 // pred_region
      %s226 = ssub.s32 128, 128
      %227 = vsyncadd [#allocation3], %s226
      %s229 = sshll.u32 [#allocation5], 4
      %s230 = int_to_ptr.vmem [resolvable:$true] %s229
      %232 = dma.vmem_to_hbm [thread:$0]  %s230, 128, %s6, [#allocation3]
    $region33: #{tpu_custom_call.1} parent=1 // pred_fallthru
      _
    // Predicated region
    $region34: #{tpu_custom_call.1} parent=1 // pred_check
      _
    $region35: #{tpu_custom_call.1} parent=1 // pred_check_branch
      %234 = sbr.rel (0) target = $region37
    $region36: #{tpu_custom_call.1} parent=1 // pred_region
      %235 = dma.done [#allocation3], 128
    $region37: #{tpu_custom_call.1} parent=1 // pred_fallthru
      _
    %236 = vsyncpa [#allocation3], 1
    %237 = vsyncpa [#allocation4], 1

</llo_original>
